<compile_context>
chip_gen: v5e
topology: v5e:2x2
jax: 0.10.0
libtpu: 0.0.40
codegen_flags: <defaults>
</compile_context>

<pallas_src>
import functools

import jax
import jax.numpy as jnp
from jax.experimental import pallas as pl
from jax.experimental.pallas import tpu as pltpu


def _lane_roll(x, delta, L):
    """out[..., p] = x[..., (p - delta) mod L]  (delta is a static int)."""
    d = delta % L                       # Python mod -> always non-negative
    if d == 0:
        return x
    if L % 128 == 0:
        # Native XLU lane rotation (matches jnp.roll semantics).
        return pltpu.roll(x, shift=d, axis=1)
    # Fallback for non-lane-aligned L: static slice + concat.
    return jnp.roll(x, d, axis=1)


def _patch_shift_kernel(mask_ref, x_ref, o_ref, *, L, deltas):
    """mask_ref: (4, L) f32 0/1 validity; x_ref: (tc, L); o_ref: (5, tc, L)."""
    x = x_ref[...]
    zero = jnp.zeros_like(x)

    # Slab 0: verbatim copy of x (channels [0:C) of the concatenated output).
    o_ref[0] = x

    # Slabs 1..4: lu, ru, lb, rb — lane roll + (1, L) validity mask.
    for k, delta in enumerate(deltas):
        rolled = _lane_roll(x, delta, L)
        valid = mask_ref[k:k + 1, :] != 0.0        # (1, L) bool, bcast over tc
        o_ref[k + 1] = jnp.where(valid, rolled, zero)


def _pick_c_tile(C, L, itemsize, budget_bytes=2 << 20):
    """Largest channel tile whose x-slab fits `budget_bytes`, so the
    double-buffered (1 in + 5 out) footprint stays well inside scoped VMEM."""
    if C * L * itemsize <= budget_bytes:
        return C
    best = None
    for tc in range(C, 0, -1):
        if C % tc == 0 and tc * L * itemsize <= budget_bytes:
            if tc % 8 == 0:             # sublane-friendly divisor preferred
                return tc
            if best is None:
                best = tc
    return best if best is not None else C


def patch_shifting(x, patch_size):
    """Pallas equivalent of PatchShifting.forward; x: (B, C, H, W)."""
    B, C, H, W = x.shape
    s = int(patch_size * (1 / 2))       # same truncation as the PyTorch module
    L = H * W

    # Lane-dense view: flatten (H, W) -> L (free contiguous reshape).
    x_flat = x.reshape(B, C, L)

    # Flat-index source deltas of the four diagonal shifts (lu, ru, lb, rb).
    deltas = (s * W + s, s * W - s, -(s * W - s), -(s * W + s))

    # Validity masks, computed once and reused by every grid step.
    row = jnp.arange(H, dtype=jnp.int32).reshape(H, 1)
    col = jnp.arange(W, dtype=jnp.int32).reshape(1, W)
    top, bot = row >= s, row < H - s
    left, right = col >= s, col < W - s
    masks = jnp.stack(
        [
            (top & left).astype(jnp.float32).reshape(L),     # lu
            (top & right).astype(jnp.float32).reshape(L),    # ru
            (bot & left).astype(jnp.float32).reshape(L),     # lb
            (bot & right).astype(jnp.float32).reshape(L),    # rb
        ],
        axis=0,
    )                                                         # (4, L)

    tc = _pick_c_tile(C, L, x.dtype.itemsize)
    grid = (B, C // tc)

    kernel = functools.partial(_patch_shift_kernel, L=L, deltas=deltas)

    out = pl.pallas_call(
        kernel,
        out_shape=jax.ShapeDtypeStruct((B, 5, C, L), x.dtype),
        grid=grid,
        in_specs=[
            pl.BlockSpec((4, L), lambda b, c: (0, 0)),            # shared masks
            pl.BlockSpec((None, tc, L), lambda b, c: (b, c, 0)),  # x tile
        ],
        out_specs=pl.BlockSpec((None, 5, tc, L), lambda b, c: (b, 0, c, 0)),
        compiler_params=pltpu.CompilerParams(
            dimension_semantics=("parallel", "parallel"),
            vmem_limit_bytes=32 * 1024 * 1024,
        ),
    )(masks, x_flat)

    # (B, 5, C, L) and (B, 5C, H, W) share the same contiguous layout.
    return out.reshape(B, 5 * C, H, W)


def reference_patch_shifting(x, patch_size):
    """Pure-JAX mirror of the PyTorch forward."""
    s = int(patch_size * (1 / 2))
    if s == 0:
        return jnp.concatenate([x] * 5, axis=1)
    xp = jnp.pad(x, ((0, 0), (0, 0), (s, s), (s, s)))
    x_lu = xp[:, :, : -2 * s, : -2 * s]
    x_ru = xp[:, :, : -2 * s, 2 * s:]
    x_lb = xp[:, :, 2 * s:, : -2 * s]
    x_rb = xp[:, :, 2 * s:, 2 * s:]
    return jnp.concatenate([x, x_lu, x_ru, x_lb, x_rb], axis=1)


if __name__ == "__main__":
    B, C, H, W = 2, 4, 16, 16
    patch_size = 2                       # -> shift = 1

    key = jax.random.PRNGKey(0)
    x = jax.random.normal(key, (B, C, H, W), jnp.float32)

    y = patch_shifting(x, patch_size)
    y = jax.block_until_ready(y)

    y_ref = reference_patch_shifting(x, patch_size)
    assert y.shape == (B, 5 * C, H, W)
    assert jnp.allclose(y, y_ref), "mismatch vs reference"

    print("KERNEL_OK")
</pallas_src>

<mosaic_0001>
module attributes {stable_mosaic.version = 11 : i64} {
  func.func @_patch_shift_kernel(%arg0: i32, %arg1: i32, %arg2: memref<4x256xf32, #tpu.memory_space<vmem>>, %arg3: memref<1x4x256xf32, #tpu.memory_space<vmem>>, %arg4: memref<1x5x4x256xf32, #tpu.memory_space<vmem>>) attributes {dimension_semantics = [#tpu.dimension_semantics<parallel>, #tpu.dimension_semantics<parallel>], iteration_bounds = array<i64: 2, 1>, scalar_prefetch = 0 : i64, scratch_operands = 0 : i64, tpu.core_type = #tpu.core_type<tc>, window_params = [{pipeline_mode = #tpu.pipeline_mode<synchronous>, transform_indices = @transform_0, window_bounds = array<i64: 4, 256>}, {transform_indices = @transform_1, window_bounds = array<i64: 1, 4, 256>}, {transform_indices = @transform_2, window_bounds = array<i64: 1, 5, 4, 256>}]} {
    %c0 = arith.constant 0 : index
    %c0_0 = arith.constant 0 : index
    %c0_1 = arith.constant 0 : index
    %0 = vector.load %arg3[%c0, %c0_0, %c0_1] : memref<1x4x256xf32, #tpu.memory_space<vmem>>, vector<1x4x256xf32>
    %1 = vector.shape_cast %0 : vector<1x4x256xf32> to vector<4x256xf32>
    %cst = arith.constant 0.000000e+00 : f32
    %2 = vector.broadcast %cst : f32 to vector<4x256xf32>
    %c0_2 = arith.constant 0 : index
    %c0_3 = arith.constant 0 : index
    %c0_4 = arith.constant 0 : index
    %c0_5 = arith.constant 0 : index
    %3 = vector.load %arg4[%c0_2, %c0_3, %c0_4, %c0_5] : memref<1x5x4x256xf32, #tpu.memory_space<vmem>>, vector<1x1x4x256xf32>
    %4 = vector.shape_cast %3 : vector<1x1x4x256xf32> to vector<4x256xf32>
    %5 = vector.shape_cast %1 : vector<4x256xf32> to vector<1x1x4x256xf32>
    tpu.vector_store %arg4[%c0_2, %c0_3, %c0_4, %c0_5], %5 {strides = array<i32>} : memref<1x5x4x256xf32, #tpu.memory_space<vmem>>, vector<1x1x4x256xf32>,
    %c17_i32 = arith.constant 17 : i32
    %6 = tpu.dynamic_rotate %1 by %c17_i32 dim 1 : vector<4x256xf32>, i32 -> vector<4x256xf32>
    %c0_6 = arith.constant 0 : index
    %c0_7 = arith.constant 0 : index
    %7 = vector.load %arg2[%c0_6, %c0_7] : memref<4x256xf32, #tpu.memory_space<vmem>>, vector<1x256xf32>
    %cst_8 = arith.constant 0.000000e+00 : f32
    %8 = vector.broadcast %cst_8 : f32 to vector<1x256xf32>
    %9 = arith.cmpf one, %7, %8 : vector<1x256xf32>
    %10 = vector.shape_cast %9 : vector<1x256xi1> to vector<1x256xi1>
    %11 = vector.broadcast %10 : vector<1x256xi1> to vector<4x256xi1>
    %12 = arith.select %11, %6, %2 : vector<4x256xi1>, vector<4x256xf32>
    %c0_9 = arith.constant 0 : index
    %c1 = arith.constant 1 : index
    %c0_10 = arith.constant 0 : index
    %c0_11 = arith.constant 0 : index
    %13 = vector.load %arg4[%c0_9, %c1, %c0_10, %c0_11] : memref<1x5x4x256xf32, #tpu.memory_space<vmem>>, vector<1x1x4x256xf32>
    %14 = vector.shape_cast %13 : vector<1x1x4x256xf32> to vector<4x256xf32>
    %15 = vector.shape_cast %12 : vector<4x256xf32> to vector<1x1x4x256xf32>
    tpu.vector_store %arg4[%c0_9, %c1, %c0_10, %c0_11], %15 {strides = array<i32>} : memref<1x5x4x256xf32, #tpu.memory_space<vmem>>, vector<1x1x4x256xf32>,
    %c15_i32 = arith.constant 15 : i32
    %16 = tpu.dynamic_rotate %1 by %c15_i32 dim 1 : vector<4x256xf32>, i32 -> vector<4x256xf32>
    %c1_12 = arith.constant 1 : index
    %c0_13 = arith.constant 0 : index
    %17 = vector.load %arg2[%c1_12, %c0_13] : memref<4x256xf32, #tpu.memory_space<vmem>>, vector<1x256xf32>
    %cst_14 = arith.constant 0.000000e+00 : f32
    %18 = vector.broadcast %cst_14 : f32 to vector<1x256xf32>
    %19 = arith.cmpf one, %17, %18 : vector<1x256xf32>
    %20 = vector.shape_cast %19 : vector<1x256xi1> to vector<1x256xi1>
    %21 = vector.broadcast %20 : vector<1x256xi1> to vector<4x256xi1>
    %22 = arith.select %21, %16, %2 : vector<4x256xi1>, vector<4x256xf32>
    %c0_15 = arith.constant 0 : index
    %c2 = arith.constant 2 : index
    %c0_16 = arith.constant 0 : index
    %c0_17 = arith.constant 0 : index
    %23 = vector.load %arg4[%c0_15, %c2, %c0_16, %c0_17] : memref<1x5x4x256xf32, #tpu.memory_space<vmem>>, vector<1x1x4x256xf32>
    %24 = vector.shape_cast %23 : vector<1x1x4x256xf32> to vector<4x256xf32>
    %25 = vector.shape_cast %22 : vector<4x256xf32> to vector<1x1x4x256xf32>
    tpu.vector_store %arg4[%c0_15, %c2, %c0_16, %c0_17], %25 {strides = array<i32>} : memref<1x5x4x256xf32, #tpu.memory_space<vmem>>, vector<1x1x4x256xf32>,
    %c241_i32 = arith.constant 241 : i32
    %26 = tpu.dynamic_rotate %1 by %c241_i32 dim 1 : vector<4x256xf32>, i32 -> vector<4x256xf32>
    %c2_18 = arith.constant 2 : index
    %c0_19 = arith.constant 0 : index
    %27 = vector.load %arg2[%c2_18, %c0_19] : memref<4x256xf32, #tpu.memory_space<vmem>>, vector<1x256xf32>
    %cst_20 = arith.constant 0.000000e+00 : f32
    %28 = vector.broadcast %cst_20 : f32 to vector<1x256xf32>
    %29 = arith.cmpf one, %27, %28 : vector<1x256xf32>
    %30 = vector.shape_cast %29 : vector<1x256xi1> to vector<1x256xi1>
    %31 = vector.broadcast %30 : vector<1x256xi1> to vector<4x256xi1>
    %32 = arith.select %31, %26, %2 : vector<4x256xi1>, vector<4x256xf32>
    %c0_21 = arith.constant 0 : index
    %c3 = arith.constant 3 : index
    %c0_22 = arith.constant 0 : index
    %c0_23 = arith.constant 0 : index
    %33 = vector.load %arg4[%c0_21, %c3, %c0_22, %c0_23] : memref<1x5x4x256xf32, #tpu.memory_space<vmem>>, vector<1x1x4x256xf32>
    %34 = vector.shape_cast %33 : vector<1x1x4x256xf32> to vector<4x256xf32>
    %35 = vector.shape_cast %32 : vector<4x256xf32> to vector<1x1x4x256xf32>
    tpu.vector_store %arg4[%c0_21, %c3, %c0_22, %c0_23], %35 {strides = array<i32>} : memref<1x5x4x256xf32, #tpu.memory_space<vmem>>, vector<1x1x4x256xf32>,
    %c239_i32 = arith.constant 239 : i32
    %36 = tpu.dynamic_rotate %1 by %c239_i32 dim 1 : vector<4x256xf32>, i32 -> vector<4x256xf32>
    %c3_24 = arith.constant 3 : index
    %c0_25 = arith.constant 0 : index
    %37 = vector.load %arg2[%c3_24, %c0_25] : memref<4x256xf32, #tpu.memory_space<vmem>>, vector<1x256xf32>
    %cst_26 = arith.constant 0.000000e+00 : f32
    %38 = vector.broadcast %cst_26 : f32 to vector<1x256xf32>
    %39 = arith.cmpf one, %37, %38 : vector<1x256xf32>
    %40 = vector.shape_cast %39 : vector<1x256xi1> to vector<1x256xi1>
    %41 = vector.broadcast %40 : vector<1x256xi1> to vector<4x256xi1>
    %42 = arith.select %41, %36, %2 : vector<4x256xi1>, vector<4x256xf32>
    %c0_27 = arith.constant 0 : index
    %c4 = arith.constant 4 : index
    %c0_28 = arith.constant 0 : index
    %c0_29 = arith.constant 0 : index
    %43 = vector.load %arg4[%c0_27, %c4, %c0_28, %c0_29] : memref<1x5x4x256xf32, #tpu.memory_space<vmem>>, vector<1x1x4x256xf32>
    %44 = vector.shape_cast %43 : vector<1x1x4x256xf32> to vector<4x256xf32>
    %45 = vector.shape_cast %42 : vector<4x256xf32> to vector<1x1x4x256xf32>
    tpu.vector_store %arg4[%c0_27, %c4, %c0_28, %c0_29], %45 {strides = array<i32>} : memref<1x5x4x256xf32, #tpu.memory_space<vmem>>, vector<1x1x4x256xf32>,
    return
  }
  func.func @transform_0(%arg0: i32, %arg1: i32) -> (i32, i32) {
    %c0_i32 = arith.constant 0 : i32
    %c0_i32_0 = arith.constant 0 : i32
    %c0_i32_1 = arith.constant 0 : i32
    return %c0_i32, %c0_i32_0 : i32, i32
  }
  func.func @transform_1(%arg0: i32, %arg1: i32) -> (i32, i32, i32) {
    %c0_i32 = arith.constant 0 : i32
    %c0_i32_0 = arith.constant 0 : i32
    return %arg0, %arg1, %c0_i32 : i32, i32, i32
  }
  func.func @transform_2(%arg0: i32, %arg1: i32) -> (i32, i32, i32, i32) {
    %c0_i32 = arith.constant 0 : i32
    %c0_i32_0 = arith.constant 0 : i32
    %c0_i32_1 = arith.constant 0 : i32
    return %arg0, %c0_i32, %arg1, %c0_i32_0 : i32, i32, i32, i32
  }
}

</mosaic_0001>

<llo_original>
// kernel: tpu_custom_call.1
$region0: #{tpu_custom_call.1}
  #allocation0 [shape = 'u32[]', space=smem, size = 0x4, offset = 0x4, fixed_abs, tag = 'smem constant byte address 0x4 - core index']
  #allocation1 [shape = 'u32[72,128]{1,0:T(1,128)}', space=vmem, size = 0x9000, scoped, tag = 'internal scratch']
  %s0 = inlined_call_operand.hbm [shape: f32[4,256], index: 0, kind: input, shape index: {}]
  %s1 = inlined_call_operand.hbm [shape: f32[2,4,256], index: 1, kind: input, shape index: {}]
  %s2 = inlined_call_operand.hbm [shape: f32[2,5,4,256], index: 2, kind: output, shape index: {}]
  %s3 = sld [smem:[#allocation0]]
  $region49: #{tpu_custom_call.1} parent=0
    _
  %s5 = ssub.s32 1, %s3
  %s6 = scalar_select 0, %s5, %s3
  $region1: #{tpu_custom_call.1} parent=0
    #allocation2 [shape = 'u8[4096]{0}', space=vmem, size = 0x1000, scoped, tag = 'input window, operand 0, single buffered']
    #allocation3 [shape = 's32[2]{0}', space=sflag, size = 0x8, scoped, tag = 'scoped memory for tpu_custom_call.1']
    #allocation4 [shape = 's32[2]{0}', space=sflag, size = 0x8, scoped, tag = 'scoped memory for tpu_custom_call.1']
    #allocation5 [shape = 'u8[8192]{0}', space=vmem, size = 0x2000, scoped, tag = 'input window, operand 1']
    #allocation6 [shape = 's32[2]{0}', space=sflag, size = 0x8, scoped, tag = 'scoped memory for tpu_custom_call.1']
    #allocation7 [shape = 'u8[40960]{0}', space=vmem, size = 0xa000, scoped, tag = 'output window, operand 0']
    %7 = vsyncpa [#allocation3], 0
    %8 = vsyncpa [#allocation6], 0
    %s9 = scalar_lea.sflag [#allocation6], 1
    %10 = vsyncpa %s9, 0
    %11 = vsyncpa [#allocation4], 0
    %s12 = scalar_lea.sflag [#allocation4], 1
    %13 = vsyncpa %s12, 0
    loop: start=0, step=1, limit=4
    $region2: #{tpu_custom_call.1} parent=1 // loop_pre_header
      _
    $region3: #{tpu_custom_call.1} parent=1 // loop_header
      %s15 = sphi 0, %s19
      %p16 = scmp.ge.s32.totalorder %s15, 4
      %s22 = sphi 0, %s34
      %s23 = sphi 0, %s30
      %s24 = sphi 0, %s22
      %s25 = sphi 0, %s23
      %s26 = sphi 0, %s24
      %s27 = sphi 0, %s25
      %s35 = sphi 0, %s35
      %s37 = sphi 0, %s35
      %s38 = sphi 0, %s37
      %s52 = sphi 0, %s38
      %s60 = sphi 0, %s62
      %s63 = sphi 0, %s60
      %s64 = sphi 0, %s63
      %s80 = sphi 0, %s64
      %s88 = sphi 0, %s90
      %s91 = sphi 0, %s88
      %s92 = sphi 0, %s91
      %s108 = sphi 0, %s92
    $region4: #{tpu_custom_call.1} parent=1 // loop_header_branch
      %18 = sbr.rel (%p16) target = $region8
    $region5: #{tpu_custom_call.1} parent=1 // loop_body
      %s20 = ssub.s32 %s15, 1
      %s21 = ssub.s32 %s15, 2
      %s28 = sadd.s32 1, %s23
      %p29 = scmp.ge.s32.totalorder %s28, 1
      %s30 = scalar_select %p29, 0, %s28
      %s31 = sadd.s32 1, %s22
      %s32 = scalar_select %p29, %s31, %s22
      %p33 = scmp.ge.s32.totalorder %s32, 2
      %s34 = scalar_select %p33, 0, %s32
      %s36 = sadd.s32 %s35, 1
      %p39 = scmp.eq.s32.totalorder %s15, 1
      %p40 = scmp.ne.s32.totalorder %s35, %s37
      %p41 = scmp.eq.s32.totalorder %s15, 0
      %p42 = por %p40, %p41
      %p43 = scmp.ne.s32.totalorder %s35, %s37
      %p44 = scmp.eq.s32.totalorder %s20, 1
      %p45 = por %p43, %p44
      %p46 = scmp.ne.s32.totalorder %s37, %s38
      %p47 = scmp.eq.s32.totalorder %s20, 0
      %p48 = por %p46, %p47
      %p49 = scmp.ne.s32.totalorder %s37, %s38
      %p50 = scmp.eq.s32.totalorder %s21, 1
      %p51 = por %p49, %p50
      %p53 = scmp.ne.s32.totalorder %s38, %s52
      %p54 = scmp.eq.s32.totalorder %s21, 0
      %p55 = por %p53, %p54
      %s56 = ssub.s32 %s22, %s34
      %s57 = ssub.s32 %s23, %s30
      %s58 = sor.u32 %s56, %s57
      %p59 = scmp.eq.s32.totalorder %s58, 0
      %s61 = sadd.s32 %s60, 1
      %s62 = scalar_select %p59, %s60, %s61
      %p65 = pneg %p59
      %p66 = scmp.eq.s32.totalorder %s15, 1
      %p67 = por %p65, %p66
      %p68 = scmp.ne.s32.totalorder %s60, %s63
      %p69 = scmp.eq.s32.totalorder %s15, 0
      %p70 = por %p68, %p69
      %p71 = scmp.ne.s32.totalorder %s60, %s63
      %p72 = scmp.eq.s32.totalorder %s20, 1
      %p73 = por %p71, %p72
      %p74 = scmp.ne.s32.totalorder %s63, %s64
      %p75 = scmp.eq.s32.totalorder %s20, 0
      %p76 = por %p74, %p75
      %p77 = scmp.ne.s32.totalorder %s63, %s64
      %p78 = scmp.eq.s32.totalorder %s21, 1
      %p79 = por %p77, %p78
      %p81 = scmp.ne.s32.totalorder %s64, %s80
      %p82 = scmp.eq.s32.totalorder %s21, 0
      %p83 = por %p81, %p82
      %s84 = ssub.s32 %s22, %s34
      %s85 = ssub.s32 %s23, %s30
      %s86 = sor.u32 %s84, %s85
      %p87 = scmp.eq.s32.totalorder %s86, 0
      %s89 = sadd.s32 %s88, 1
      %s90 = scalar_select %p87, %s88, %s89
      %p93 = pneg %p87
      %p94 = scmp.eq.s32.totalorder %s15, 1
      %p95 = por %p93, %p94
      %p96 = scmp.ne.s32.totalorder %s88, %s91
      %p97 = scmp.eq.s32.totalorder %s15, 0
      %p98 = por %p96, %p97
      %p99 = scmp.ne.s32.totalorder %s88, %s91
      %p100 = scmp.eq.s32.totalorder %s20, 1
      %p101 = por %p99, %p100
      %p102 = scmp.ne.s32.totalorder %s91, %s92
      %p103 = scmp.eq.s32.totalorder %s20, 0
      %p104 = por %p102, %p103
      %p105 = scmp.ne.s32.totalorder %s91, %s92
      %p106 = scmp.eq.s32.totalorder %s21, 1
      %p107 = por %p105, %p106
      %p109 = scmp.ne.s32.totalorder %s92, %s108
      %p110 = scmp.eq.s32.totalorder %s21, 0
      %p111 = por %p109, %p110
      %p112 = scmp.le.s32.totalorder 1, %s15
      %p113 = scmp.lt.s32.totalorder %s15, 3
      %p114 = pnand %p112, %p113
      %p115 = pneg %p114
      // Predicated region
      $region9: #{tpu_custom_call.1} parent=5 // pred_check
        _
      $region10: #{tpu_custom_call.1} parent=5 // pred_check_branch
        %117 = sbr.rel (%p114) target = $region12
      $region11: #{tpu_custom_call.1} parent=5 // pred_region
        %s118 = ssub.s32 %s15, 1
        // Predicated region
        $region13: #{tpu_custom_call.1} parent=11 // pred_check
          %p119 = pneg %p48
        $region14: #{tpu_custom_call.1} parent=11 // pred_check_branch
          %121 = sbr.rel (%p119) target = $region16
        $region15: #{tpu_custom_call.1} parent=11 // pred_region
          %123 = vsyncadd [#allocation3], 0
          %s125 = sshll.u32 %s0, 4
          %s126 = int_to_ptr.hbm [resolvable:$true] %s125
          %s127 = sshll.u32 [#allocation2], 4
          %s128 = int_to_ptr.vmem [resolvable:$true] %s127
          %130 = dma.hbm_to_vmem [thread:$0]  %s126, 128, %s128, [#allocation3]
        $region16: #{tpu_custom_call.1} parent=11 // pred_fallthru
          _
      $region12: #{tpu_custom_call.1} parent=5 // pred_fallthru
        _
      %p131 = scmp.lt.s32.totalorder %s15, 2
      // Predicated region
      $region17: #{tpu_custom_call.1} parent=5 // pred_check
        %p132 = pneg %p131
      $region18: #{tpu_custom_call.1} parent=5 // pred_check_branch
        %134 = sbr.rel (%p132) target = $region20
      $region19: #{tpu_custom_call.1} parent=5 // pred_region
        // Predicated region
        $region21: #{tpu_custom_call.1} parent=19 // pred_check
          %p135 = pneg %p70
        $region22: #{tpu_custom_call.1} parent=19 // pred_check_branch
          %137 = sbr.rel (%p135) target = $region24
        $region23: #{tpu_custom_call.1} parent=19 // pred_region
          %s138 = sand.u32 %s60, 1
          %s139 = scalar_lea.sflag [#allocation6], %s138
          %s140 = sand.u32 %s60, 1
          %s141 = smul.addr %s140, 8
          %s142 = scalar_lea.vmem [#allocation5], %s141
          %144 = vsyncadd %s139, 0
          %s145 = smul.addr %s23, 2
          %s146 = smul.addr %s22, 2
          %s147 = sadd.s32 %s145, %s146
          %s148 = smul.addr %s147, 4
          %s149 = scalar_lea.hbm %s1, %s148
          %s151 = sshll.u32 %s149, 4
          %s152 = int_to_ptr.hbm [resolvable:$true] %s151
          %s153 = sshll.u32 %s142, 4
          %s154 = int_to_ptr.vmem [resolvable:$true] %s153
          %156 = dma.hbm_to_vmem [thread:$0]  %s152, 128, %s154, %s139
        $region24: #{tpu_custom_call.1} parent=19 // pred_fallthru
          _
      $region20: #{tpu_custom_call.1} parent=5 // pred_fallthru
        _
      %p157 = scmp.le.s32.totalorder 1, %s15
      %p158 = scmp.lt.s32.totalorder %s15, 3
      %p159 = pnand %p157, %p158
      %p160 = pneg %p159
      // Predicated region
      $region25: #{tpu_custom_call.1} parent=5 // pred_check
        _
      $region26: #{tpu_custom_call.1} parent=5 // pred_check_branch
        %162 = sbr.rel (%p159) target = $region28
      $region27: #{tpu_custom_call.1} parent=5 // pred_region
        %s163 = ssub.s32 %s15, 1
        // Predicated region
        $region29: #{tpu_custom_call.1} parent=27 // pred_check
          %p164 = pneg %p48
        $region30: #{tpu_custom_call.1} parent=27 // pred_check_branch
          %166 = sbr.rel (%p164) target = $region32
        $region31: #{tpu_custom_call.1} parent=27 // pred_region
          %168 = dma.done [#allocation3], 128
        $region32: #{tpu_custom_call.1} parent=27 // pred_fallthru
          _
        %s169 = sand.u32 %s63, 1
        %s170 = scalar_lea.sflag [#allocation6], %s169
        %s171 = sand.u32 %s63, 1
        %s172 = smul.addr %s171, 8
        %s173 = scalar_lea.vmem [#allocation5], %s172
        // Predicated region
        $region33: #{tpu_custom_call.1} parent=27 // pred_check
          %p174 = pneg %p76
        $region34: #{tpu_custom_call.1} parent=27 // pred_check_branch
          %176 = sbr.rel (%p174) target = $region36
        $region35: #{tpu_custom_call.1} parent=27 // pred_region
          %178 = dma.done %s170, 128
        $region36: #{tpu_custom_call.1} parent=27 // pred_fallthru
          _
        %p179 = pneg %p48
        %p180 = pneg %p45
        %s181 = sand.u32 %s63, 1
        %s182 = scalar_lea.sflag [#allocation6], %s181
        %s183 = sand.u32 %s63, 1
        %s184 = smul.addr %s183, 8
        %s185 = scalar_lea.vmem [#allocation5], %s184
        %p186 = pneg %p76
        %p187 = pneg %p73
        %p188 = pneg %p104
        %p189 = pneg %p101
        %s190 = sand.u32 %s91, 1
        %s191 = scalar_lea.sflag [#allocation4], %s190
        %s192 = sand.u32 %s91, 1
        %s193 = smul.addr %s192, 40
        %s194 = scalar_lea.vmem [#allocation7], %s193
        %v195 = vld [vmem:[%s173] sm:$0xff]
        %196 = vst [vmem:[%s194] sm:$0xff] %v195
        %198 = vst [vmem:[#allocation1] ss:$2 sm:$0xff] %v195
        %v199 = vld.sshfl [vmem:[#allocation1] sm:$0xff pattern:$0x75316420]
        %v200 = vld.sshfl [vmem:[#allocation1 + $0x8] sm:$0xff pattern:$0x75316420]
        %203 = vrot.lane.b32.xlu0 %v199, 17
        %v204 = vpop.permute.xlu0 %203
        %205 = vrot.lane.b32.xlu0 %v200, 17
        %v206 = vpop.permute.xlu0 %205
        %v207 = vlaneseq
        %v208 = vand.u32 %v207, 127
        %vm209 = vcmp.lt.s32.totalorder %v208, 17
        %v210 = vsel %vm209, %v204, %v206
        %v211 = vsel %vm209, %v206, %v204
        %v212 = vld [vmem:[#allocation2] ss:$4 sm:$0x3]
        %vm213 = vcmp.ne.f32.partialorder %v212, 0.0
        %v214 = vsel %vm213, 1, 0
        %v215 = vperm.slane %v214, 0
        %v216 = vperm.slane %v214, 1
        %vm217 = vcmp.eq.s32.totalorder %v215, 1
        %vm218 = vcmp.eq.s32.totalorder %v216, 1
        %v219 = vsel %vm217, %v211, 0.0
        %v220 = vsel %vm218, %v210, 0.0
        %v223 = vrot.slane %v220, 4
        %vm224 = vcmask 1043456
        %v225 = vsel %vm224, %v219, %v223
        %s227 = scalar_lea.vmem %s194, 8 [#allocation7]
        %228 = vst [vmem:[%s227] sm:$0xff] %v225
        %229 = vst [vmem:[#allocation1] ss:$2 sm:$0xff] %v195
        %v230 = vld.sshfl [vmem:[#allocation1] sm:$0xff pattern:$0x75316420]
        %v231 = vld.sshfl [vmem:[#allocation1 + $0x8] sm:$0xff pattern:$0x75316420]
        %234 = vrot.lane.b32.xlu0 %v230, 15
        %v235 = vpop.permute.xlu0 %234
        %236 = vrot.lane.b32.xlu0 %v231, 15
        %v237 = vpop.permute.xlu0 %236
        %vm238 = vcmp.lt.s32.totalorder %v208, 15
        %v239 = vsel %vm238, %v235, %v237
        %v240 = vsel %vm238, %v237, %v235
        %s241 = scalar_lea.vmem [#allocation2], 1
        %v242 = vld [vmem:[%s241] ss:$4 sm:$0x3]
        %vm243 = vcmp.ne.f32.partialorder %v242, 0.0
        %v244 = vsel %vm243, 1, 0
        %v245 = vperm.slane %v244, 0
        %v246 = vperm.slane %v244, 1
        %vm247 = vcmp.eq.s32.totalorder %v245, 1
        %vm248 = vcmp.eq.s32.totalorder %v246, 1
        %v249 = vsel %vm247, %v240, 0.0
        %v250 = vsel %vm248, %v239, 0.0
        %v253 = vrot.slane %v250, 4
        %v254 = vsel %vm224, %v249, %v253
        %s256 = scalar_lea.vmem %s194, 16 [#allocation7]
        %257 = vst [vmem:[%s256] sm:$0xff] %v254
        %258 = vst [vmem:[#allocation1] ss:$2 sm:$0xff] %v195
        %v259 = vld.sshfl [vmem:[#allocation1] sm:$0xff pattern:$0x75316420]
        %v260 = vld.sshfl [vmem:[#allocation1 + $0x8] sm:$0xff pattern:$0x75316420]
        %263 = vrot.lane.b32.xlu0 %v259, 113
        %v264 = vpop.permute.xlu0 %263
        %265 = vrot.lane.b32.xlu0 %v260, 113
        %v266 = vpop.permute.xlu0 %265
        %vm267 = vcmp.lt.s32.totalorder %v208, 113
        %v268 = vsel %vm267, %v264, %v266
        %v269 = vsel %vm267, %v266, %v264
        %s270 = scalar_lea.vmem [#allocation2], 2
        %v271 = vld [vmem:[%s270] ss:$4 sm:$0x3]
        %vm272 = vcmp.ne.f32.partialorder %v271, 0.0
        %v273 = vsel %vm272, 1, 0
        %v274 = vperm.slane %v273, 0
        %v275 = vperm.slane %v273, 1
        %vm276 = vcmp.eq.s32.totalorder %v274, 1
        %vm277 = vcmp.eq.s32.totalorder %v275, 1
        %v278 = vsel %vm276, %v268, 0.0
        %v279 = vsel %vm277, %v269, 0.0
        %v282 = vrot.slane %v279, 4
        %v283 = vsel %vm224, %v278, %v282
        %s285 = scalar_lea.vmem %s194, 24 [#allocation7]
        %286 = vst [vmem:[%s285] sm:$0xff] %v283
        %287 = vst [vmem:[#allocation1] ss:$2 sm:$0xff] %v195
        %v288 = vld.sshfl [vmem:[#allocation1] sm:$0xff pattern:$0x75316420]
        %v289 = vld.sshfl [vmem:[#allocation1 + $0x8] sm:$0xff pattern:$0x75316420]
        %292 = vrot.lane.b32.xlu0 %v288, 111
        %v293 = vpop.permute.xlu0 %292
        %294 = vrot.lane.b32.xlu0 %v289, 111
        %v295 = vpop.permute.xlu0 %294
        %vm296 = vcmp.lt.s32.totalorder %v208, 111
        %v297 = vsel %vm296, %v293, %v295
        %v298 = vsel %vm296, %v295, %v293
        %s299 = scalar_lea.vmem [#allocation2], 3
        %v300 = vld [vmem:[%s299] ss:$4 sm:$0x3]
        %vm301 = vcmp.ne.f32.partialorder %v300, 0.0
        %v302 = vsel %vm301, 1, 0
        %v303 = vperm.slane %v302, 0
        %v304 = vperm.slane %v302, 1
        %vm305 = vcmp.eq.s32.totalorder %v303, 1
        %vm306 = vcmp.eq.s32.totalorder %v304, 1
        %v307 = vsel %vm305, %v297, 0.0
        %v308 = vsel %vm306, %v298, 0.0
        %v311 = vrot.slane %v308, 4
        %v312 = vsel %vm224, %v307, %v311
        %s314 = scalar_lea.vmem %s194, 32 [#allocation7]
        %315 = vst [vmem:[%s314] sm:$0xff] %v312
        %s316 = sand.u32 %s91, 1
        %s317 = scalar_lea.sflag [#allocation4], %s316
        %s318 = sand.u32 %s91, 1
        %s319 = smul.addr %s318, 40
        %s320 = scalar_lea.vmem [#allocation7], %s319
        // Predicated region
        $region37: #{tpu_custom_call.1} parent=27 // pred_check
          %p321 = pneg %p101
        $region38: #{tpu_custom_call.1} parent=27 // pred_check_branch
          %323 = sbr.rel (%p321) target = $region40
        $region39: #{tpu_custom_call.1} parent=27 // pred_region
          %325 = vsyncadd %s317, 0
          %s326 = smul.addr %s25, 2
          %s327 = smul.addr %s24, 10
          %s328 = sadd.s32 %s326, %s327
          %s329 = smul.addr %s328, 4
          %s330 = scalar_lea.hbm %s2, %s329
          %s331 = sshll.u32 %s320, 4
          %s332 = int_to_ptr.vmem [resolvable:$true] %s331
          %s333 = sshll.u32 %s330, 4
          %s334 = int_to_ptr.hbm [resolvable:$true] %s333
          %339 = dma.vmem_to_hbm [thread:$0]  %s332, 640, %s334, %s317, 128, 128, 8
        $region40: #{tpu_custom_call.1} parent=27 // pred_fallthru
          _
      $region28: #{tpu_custom_call.1} parent=5 // pred_fallthru
        _
      %p340 = scmp.le.s32.totalorder 2, %s15
      // Predicated region
      $region41: #{tpu_custom_call.1} parent=5 // pred_check
        %p341 = pneg %p340
      $region42: #{tpu_custom_call.1} parent=5 // pred_check_branch
        %343 = sbr.rel (%p341) target = $region44
      $region43: #{tpu_custom_call.1} parent=5 // pred_region
        %s344 = ssub.s32 %s15, 2
        // Predicated region
        $region45: #{tpu_custom_call.1} parent=43 // pred_check
          %p345 = pneg %p107
        $region46: #{tpu_custom_call.1} parent=43 // pred_check_branch
          %347 = sbr.rel (%p345) target = $region48
        $region47: #{tpu_custom_call.1} parent=43 // pred_region
          %s348 = sand.u32 %s92, 1
          %s349 = scalar_lea.sflag [#allocation4], %s348
          %s350 = sand.u32 %s92, 1
          %s351 = smul.addr %s350, 40
          %s352 = scalar_lea.vmem [#allocation7], %s351
          %354 = dma.done %s349, 640
        $region48: #{tpu_custom_call.1} parent=43 // pred_fallthru
          _
      $region44: #{tpu_custom_call.1} parent=5 // pred_fallthru
        _
    $region6: #{tpu_custom_call.1} parent=1 // loop_footer
      %s19 = sadd.s32 1, %s15
    $region7: #{tpu_custom_call.1} parent=1 // loop_footer_branch
      %14 = sbr.rel target = $region3
    $region8: #{tpu_custom_call.1} parent=1 // loop_exit
      _
    %355 = vsyncpa [#allocation3], 1
    %s356 = scalar_lea.sflag [#allocation3], 1
    %357 = vsyncpa %s356, 1
    %358 = vsyncpa [#allocation6], 1
    %s359 = scalar_lea.sflag [#allocation6], 1
    %360 = vsyncpa %s359, 1
    %361 = vsyncpa [#allocation4], 1
    %s362 = scalar_lea.sflag [#allocation4], 1
    %363 = vsyncpa %s362, 1

</llo_original>
